<compile_context>
chip_gen: v5e
topology: v5e:2x2
jax: 0.10.0
libtpu: 0.0.40
codegen_flags: <defaults>
</compile_context>

<pallas_src>
import jax
import jax.numpy as jnp
from jax.experimental import pallas as pl
from jax.experimental.pallas import tpu as pltpu

LANE = 128               # lane width (last dim of every block / chunk)
SUBL = 8                 # f32 sublane tile (accumulator height)
CHUNK_ROWS = 256         # rows per in-kernel accumulation chunk (mult. of 16)
TILE_ROWS = 4096         # rows per grid step (mult. of CHUNK_ROWS and of 16)
SINGLE_MAX_ROWS = 8192   # <= 4 MiB f32 per operand -> single-block fast path

_INV_LN10 = 0.4342944819032518  # 1 / ln(10)


def _num_tensorcores():
    """TensorCores per chip: 2 on v7x, 1 on v5e / v6e (and as a safe default)."""
    try:
        kind = jax.devices()[0].device_kind.lower()
    except Exception:
        return 1
    return 2 if "v7" in kind else 1


def _si_sdr_from_sums(s_te, s_tt, s_ee):
    """Scalar SI-SDR math given the three global sums (float32 scalars)."""
    alpha = s_te / s_tt                                  # <t,e> / ||t||^2
    norm_alpha_t = jnp.abs(alpha) * jnp.sqrt(s_tt)       # ||alpha * t||
    # ||alpha*t - e||^2 = alpha^2*s_tt - 2*alpha*s_te + s_ee = s_ee - alpha*s_te
    # TODO(synk): this closed form can cancel for extremely high-SDR inputs
    # (est ~= alpha*target, > ~60-80 dB); clamped at 0 so it never NaNs.
    diff_sq = jnp.maximum(s_ee - alpha * s_te, 0.0)
    norm_diff = jnp.sqrt(diff_sq)
    ratio = norm_alpha_t / (norm_diff + 1e-6) + 1e-6
    return -20.0 * jnp.log(ratio) * _INV_LN10


def _fold_rows(x, rows):
    """(rows, LANE) f32 -> (SUBL, LANE) per-(sublane,lane) partials (VPU adds)."""
    return jnp.sum(x.reshape(rows // SUBL, SUBL, LANE), axis=0)


def _tile_partial_sums(e_ref, t_ref, tile_rows, valid_rows=None):
    """Chunked (SUBL, LANE) partial sums of t*e, t*t, e*e over one tile.

    If `valid_rows` (traced i32) is given, rows >= valid_rows are zeroed
    (ragged last tile / fully-masked duplicated tile).
    """
    n_chunks = tile_rows // CHUNK_ROWS
    zero = jnp.zeros((SUBL, LANE), jnp.float32)
    row_iota = (jax.lax.broadcasted_iota(jnp.int32, (CHUNK_ROWS, LANE), 0)
                if valid_rows is not None else None)

    def body(c, carry):
        a_te, a_tt, a_ee = carry
        start = pl.multiple_of(c * CHUNK_ROWS, CHUNK_ROWS)
        e = e_ref[pl.ds(start, CHUNK_ROWS), :].astype(jnp.float32)
        t = t_ref[pl.ds(start, CHUNK_ROWS), :].astype(jnp.float32)
        if valid_rows is not None:
            keep = (row_iota + start) < valid_rows
            e = jnp.where(keep, e, 0.0)
            t = jnp.where(keep, t, 0.0)
        return (a_te + _fold_rows(t * e, CHUNK_ROWS),
                a_tt + _fold_rows(t * t, CHUNK_ROWS),
                a_ee + _fold_rows(e * e, CHUNK_ROWS))

    return jax.lax.fori_loop(0, n_chunks, body, (zero, zero, zero))


# ---------------------------------------------------------------------------
# Single-block fast path (whole problem fits in one VMEM block).
# ---------------------------------------------------------------------------

def _si_sdr_single_kernel(e_ref, t_ref, out_ref):
    rows = e_ref.shape[0]
    n_full = rows // CHUNK_ROWS
    rem = rows - n_full * CHUNK_ROWS

    zero = jnp.zeros((SUBL, LANE), jnp.float32)
    a_te, a_tt, a_ee = zero, zero, zero

    if n_full > 0:
        def body(c, carry):
            b_te, b_tt, b_ee = carry
            start = pl.multiple_of(c * CHUNK_ROWS, CHUNK_ROWS)
            e = e_ref[pl.ds(start, CHUNK_ROWS), :].astype(jnp.float32)
            t = t_ref[pl.ds(start, CHUNK_ROWS), :].astype(jnp.float32)
            return (b_te + _fold_rows(t * e, CHUNK_ROWS),
                    b_tt + _fold_rows(t * t, CHUNK_ROWS),
                    b_ee + _fold_rows(e * e, CHUNK_ROWS))

        a_te, a_tt, a_ee = jax.lax.fori_loop(0, n_full, body,
                                             (a_te, a_tt, a_ee))

    # One cross-lane reduce over the (8,128) partials.
    s_te = jnp.sum(a_te)
    s_tt = jnp.sum(a_tt)
    s_ee = jnp.sum(a_ee)

    if rem:  # trace-time remainder (< CHUNK_ROWS rows): direct full reduce.
        start = n_full * CHUNK_ROWS
        e = e_ref[pl.ds(start, rem), :].astype(jnp.float32)
        t = t_ref[pl.ds(start, rem), :].astype(jnp.float32)
        s_te = s_te + jnp.sum(t * e)
        s_tt = s_tt + jnp.sum(t * t)
        s_ee = s_ee + jnp.sum(e * e)

    out_ref[...] = jnp.full((1, 1), _si_sdr_from_sums(s_te, s_tt, s_ee),
                            dtype=jnp.float32)


def _si_sdr_single(pred2, target2):
    n = int(pred2.size)
    cost = pl.CostEstimate(
        flops=6 * n, transcendentals=8,
        bytes_accessed=2 * n * pred2.dtype.itemsize + 4)
    out = pl.pallas_call(
        _si_sdr_single_kernel,
        out_shape=jax.ShapeDtypeStruct((1, 1), jnp.float32),
        cost_estimate=cost,
    )(pred2, target2)
    return out[0, 0]


# ---------------------------------------------------------------------------
# Tiled path (grid over row tiles; optional 2-core split on v7x).
# ---------------------------------------------------------------------------

def _make_tiled_kernel(total_rows, tiles_per_core, needs_mask, fuse_epilogue,
                       two_axes):
    """Tiled three-sum reduction over (TILE_ROWS, LANE) blocks.

    Running sums live as three (SUBL, LANE) f32 partials in VMEM scratch
    (pure VPU adds on the hot path).  Ragged / duplicated-tile masking is
    gated behind pl.when so full tiles never pay for it.  With
    fuse_epilogue=True (single-TensorCore chips) the final cross-lane reduce
    and scalar SI-SDR math are fused into the last grid step.
    """

    def kernel(e_ref, t_ref, out_ref, acc_ref):
        if two_axes:
            p = pl.program_id(0)
            k = pl.program_id(1)
            k_last = pl.num_programs(1) - 1
        else:
            p = 0
            k = pl.program_id(0)
            k_last = pl.num_programs(0) - 1

        @pl.when(k == 0)
        def _init():
            acc_ref[...] = jnp.zeros_like(acc_ref)

        def accumulate(valid_rows=None):
            a_te, a_tt, a_ee = _tile_partial_sums(e_ref, t_ref, TILE_ROWS,
                                                  valid_rows)
            acc_ref[0] += a_te
            acc_ref[1] += a_tt
            acc_ref[2] += a_ee

        if needs_mask:
            tile_idx = p * tiles_per_core + k
            valid_rows = total_rows - tile_idx * TILE_ROWS

            @pl.when(valid_rows >= TILE_ROWS)      # hot path: full tile, no mask
            def _full_tile():
                accumulate()

            @pl.when(valid_rows < TILE_ROWS)       # ragged last / duplicated tile
            def _ragged_tile():
                accumulate(valid_rows)
        else:
            accumulate()

        @pl.when(k == k_last)
        def _finish():
            if fuse_epilogue:
                s_te = jnp.sum(acc_ref[0])
                s_tt = jnp.sum(acc_ref[1])
                s_ee = jnp.sum(acc_ref[2])
                out_ref[...] = jnp.full(
                    (1, 1), _si_sdr_from_sums(s_te, s_tt, s_ee),
                    dtype=jnp.float32)
            else:
                out_ref[0] = acc_ref[...]

    return kernel


def _si_sdr_tiled(pred2, target2, rows):
    num_cores = _num_tensorcores()
    num_tiles = pl.cdiv(rows, TILE_ROWS)
    n = rows * LANE
    itemsize = pred2.dtype.itemsize
    cost = pl.CostEstimate(
        flops=6 * n, transcendentals=8,
        bytes_accessed=2 * n * itemsize + 4 * 3 * SUBL * LANE)

    if num_cores == 1:
        # Single-TensorCore chips (v5e / v6e): one reduction axis, fused
        # epilogue, no duplicated masked tile.
        needs_mask = (rows % TILE_ROWS) != 0
        kernel = _make_tiled_kernel(rows, num_tiles, needs_mask,
                                    fuse_epilogue=True, two_axes=False)
        out = pl.pallas_call(
            kernel,
            out_shape=jax.ShapeDtypeStruct((1, 1), jnp.float32),
            grid_spec=pltpu.PrefetchScalarGridSpec(
                num_scalar_prefetch=0,
                grid=(num_tiles,),
                in_specs=[
                    pl.BlockSpec((TILE_ROWS, LANE), lambda k: (k, 0)),
                    pl.BlockSpec((TILE_ROWS, LANE), lambda k: (k, 0)),
                ],
                out_specs=pl.BlockSpec((1, 1), lambda k: (0, 0)),
                scratch_shapes=[pltpu.VMEM((3, SUBL, LANE), jnp.float32)],
            ),
            compiler_params=pltpu.CompilerParams(
                dimension_semantics=("arbitrary",)),
            cost_estimate=cost,
        )(pred2, target2)
        return out[0, 0]

    # Two TensorCores (v7x): leading "parallel" axis splits the tile range.
    tiles_per_core = pl.cdiv(num_tiles, num_cores)
    needs_mask = ((rows % TILE_ROWS) != 0) or ((num_tiles % num_cores) != 0)

    def in_map(p, k):
        tile_idx = p * tiles_per_core + k
        # Clamp so the DMA source stays in range; duplicated tiles are zeroed
        # by the masked branch in-kernel.
        return (jnp.minimum(tile_idx, num_tiles - 1), 0)

    kernel = _make_tiled_kernel(rows, tiles_per_core, needs_mask,
                                fuse_epilogue=False, two_axes=True)
    parts = pl.pallas_call(
        kernel,
        out_shape=jax.ShapeDtypeStruct((num_cores, 3, SUBL, LANE), jnp.float32),
        grid_spec=pltpu.PrefetchScalarGridSpec(
            num_scalar_prefetch=0,
            grid=(num_cores, tiles_per_core),
            in_specs=[
                pl.BlockSpec((TILE_ROWS, LANE), in_map),
                pl.BlockSpec((TILE_ROWS, LANE), in_map),
            ],
            out_specs=pl.BlockSpec((1, 3, SUBL, LANE),
                                   lambda p, k: (p, 0, 0, 0)),
            scratch_shapes=[pltpu.VMEM((3, SUBL, LANE), jnp.float32)],
        ),
        compiler_params=pltpu.CompilerParams(
            # TODO(synk): confirm with xprof that "parallel" shards the p axis
            # across both v7x TensorCores; switch to pltpu.CORE_PARALLEL if not.
            dimension_semantics=("parallel", "arbitrary")),
        cost_estimate=cost,
    )(pred2, target2)

    s_te = jnp.sum(parts[:, 0])
    s_tt = jnp.sum(parts[:, 1])
    s_ee = jnp.sum(parts[:, 2])
    return _si_sdr_from_sums(s_te, s_tt, s_ee)


# ---------------------------------------------------------------------------
# Public wrapper (matches si_sdr_loss.forward(pred, target) -> scalar).
# ---------------------------------------------------------------------------

def si_sdr_loss(pred, target):
    """Pallas TPU implementation of si_sdr_(pred, target).  Returns a scalar."""
    assert pred.shape == target.shape, (pred.shape, target.shape)
    n = pred.size
    pad = (-n) % LANE
    if pad:
        # Rare ragged case (numel not a multiple of 128): zero-pad the tail
        # (zeros do not change any of the three sums).  This is the only path
        # that copies the inputs; the common case below is a free reshape.
        pred_f = jnp.pad(pred.reshape(-1), (0, pad))
        target_f = jnp.pad(target.reshape(-1), (0, pad))
    else:
        pred_f, target_f = pred, target
    rows = (n + pad) // LANE
    pred2 = pred_f.reshape(rows, LANE)      # free: contiguous row-major view
    target2 = target_f.reshape(rows, LANE)

    if rows <= SINGLE_MAX_ROWS:
        return _si_sdr_single(pred2, target2)
    return _si_sdr_tiled(pred2, target2, rows)


def _si_sdr_ref(est, target):
    """Pure-JAX reference mirroring the PyTorch code exactly."""
    est = est.astype(jnp.float32)
    target = target.astype(jnp.float32)
    alpha = jnp.sum(target * est) / (jnp.linalg.norm(target) ** 2)
    return -20.0 * jnp.log10(
        jnp.linalg.norm(alpha * target)
        / (jnp.linalg.norm(alpha * target - est) + 1e-6) + 1e-6)


if __name__ == "__main__":
    def make_pair(k, shape, dtype=jnp.float32):
        k1, k2 = jax.random.split(k)
        target = jax.random.normal(k1, shape, dtype=jnp.float32)
        pred = target + 0.1 * jax.random.normal(k2, shape, dtype=jnp.float32)
        return pred.astype(dtype), target.astype(dtype)

    key = jax.random.PRNGKey(0)
    keys = jax.random.split(key, 6)
    TOL = dict(rtol=1e-3, atol=1e-3)

    cases = [
        # name,                key,     shape,        dtype
        ("single f32 small",   keys[0], (2, 2048),    jnp.float32),   # 32 rows
        ("single f32 ragged",  keys[1], (1, 1000),    jnp.float32),   # pad->1024
        ("single bf16",        keys[2], (4, 98304),   jnp.bfloat16),  # 3072 rows
        ("tiled f32 even",     keys[3], (16, 131072), jnp.float32),   # 16384 rows
        ("tiled f32 ragged",   keys[4], (4, 384000),  jnp.float32),   # 12000 rows
        ("tiled bf16 ragged",  keys[5], (8, 384000),  jnp.bfloat16),  # 24000 rows
    ]
    for name, kk, shape, dtype in cases:
        pred, target = make_pair(kk, shape, dtype)
        loss = si_sdr_loss(pred, target)
        jax.block_until_ready(loss)
        ref = _si_sdr_ref(pred, target)
        assert jnp.allclose(loss, ref, **TOL), (name, loss, ref)

    print("KERNEL_OK")
</pallas_src>

<mosaic_0001>
module attributes {stable_mosaic.version = 11 : i64} {
  func.func @_si_sdr_single_kernel(%arg0: memref<32x128xf32, #tpu.memory_space<vmem>>, %arg1: memref<32x128xf32, #tpu.memory_space<vmem>>, %arg2: memref<1x1xf32, #tpu.memory_space<vmem>>) attributes {dimension_semantics = [], scalar_prefetch = 0 : i64, scratch_operands = 0 : i64, tpu.core_type = #tpu.core_type<tc>} {
    %cst = arith.constant 0.000000e+00 : f32
    %0 = vector.broadcast %cst : f32 to vector<8x128xf32>
    %1 = vector.shape_cast %0 : vector<8x128xf32> to vector<1x8x128xf32>
    %cst_0 = arith.constant dense<0.000000e+00> : vector<1xf32>
    %2 = vector.multi_reduction <add>, %1, %cst_0 [1, 2] : vector<1x8x128xf32> to vector<1xf32>
    %3 = vector.shape_cast %2 : vector<1xf32> to vector<1x1x1xf32>
    %4 = vector.extract %3[0, 0, 0] : f32 from vector<1x1x1xf32>
    %5 = vector.shape_cast %0 : vector<8x128xf32> to vector<1x8x128xf32>
    %cst_1 = arith.constant dense<0.000000e+00> : vector<1xf32>
    %6 = vector.multi_reduction <add>, %5, %cst_1 [1, 2] : vector<1x8x128xf32> to vector<1xf32>
    %7 = vector.shape_cast %6 : vector<1xf32> to vector<1x1x1xf32>
    %8 = vector.extract %7[0, 0, 0] : f32 from vector<1x1x1xf32>
    %9 = vector.shape_cast %0 : vector<8x128xf32> to vector<1x8x128xf32>
    %cst_2 = arith.constant dense<0.000000e+00> : vector<1xf32>
    %10 = vector.multi_reduction <add>, %9, %cst_2 [1, 2] : vector<1x8x128xf32> to vector<1xf32>
    %11 = vector.shape_cast %10 : vector<1xf32> to vector<1x1x1xf32>
    %12 = vector.extract %11[0, 0, 0] : f32 from vector<1x1x1xf32>
    %c0 = arith.constant 0 : index
    %c0_3 = arith.constant 0 : index
    %13 = vector.load %arg0[%c0, %c0_3] : memref<32x128xf32, #tpu.memory_space<vmem>>, vector<32x128xf32>
    %c0_4 = arith.constant 0 : index
    %c0_5 = arith.constant 0 : index
    %14 = vector.load %arg1[%c0_4, %c0_5] : memref<32x128xf32, #tpu.memory_space<vmem>>, vector<32x128xf32>
    %15 = arith.mulf %14, %13 : vector<32x128xf32>
    %16 = vector.shape_cast %15 : vector<32x128xf32> to vector<1x32x128xf32>
    %cst_6 = arith.constant dense<0.000000e+00> : vector<1xf32>
    %17 = vector.multi_reduction <add>, %16, %cst_6 [1, 2] : vector<1x32x128xf32> to vector<1xf32>
    %18 = vector.shape_cast %17 : vector<1xf32> to vector<1x1x1xf32>
    %19 = vector.extract %18[0, 0, 0] : f32 from vector<1x1x1xf32>
    %20 = arith.addf %4, %19 : f32
    %21 = arith.mulf %14, %14 : vector<32x128xf32>
    %22 = vector.shape_cast %21 : vector<32x128xf32> to vector<1x32x128xf32>
    %cst_7 = arith.constant dense<0.000000e+00> : vector<1xf32>
    %23 = vector.multi_reduction <add>, %22, %cst_7 [1, 2] : vector<1x32x128xf32> to vector<1xf32>
    %24 = vector.shape_cast %23 : vector<1xf32> to vector<1x1x1xf32>
    %25 = vector.extract %24[0, 0, 0] : f32 from vector<1x1x1xf32>
    %26 = arith.addf %8, %25 : f32
    %27 = arith.mulf %13, %13 : vector<32x128xf32>
    %28 = vector.shape_cast %27 : vector<32x128xf32> to vector<1x32x128xf32>
    %cst_8 = arith.constant dense<0.000000e+00> : vector<1xf32>
    %29 = vector.multi_reduction <add>, %28, %cst_8 [1, 2] : vector<1x32x128xf32> to vector<1xf32>
    %30 = vector.shape_cast %29 : vector<1xf32> to vector<1x1x1xf32>
    %31 = vector.extract %30[0, 0, 0] : f32 from vector<1x1x1xf32>
    %32 = arith.addf %12, %31 : f32
    %33 = arith.divf %20, %26 : f32
    %34 = math.absf %33 : f32
    %35 = math.sqrt %26 : f32
    %36 = arith.mulf %34, %35 : f32
    %37 = arith.mulf %33, %20 : f32
    %38 = arith.subf %32, %37 : f32
    %cst_9 = arith.constant 0.000000e+00 : f32
    %39 = arith.maximumf %38, %cst_9 : f32
    %40 = math.sqrt %39 : f32
    %cst_10 = arith.constant 9.99999997E-7 : f32
    %41 = arith.addf %40, %cst_10 : f32
    %42 = arith.divf %36, %41 : f32
    %cst_11 = arith.constant 9.99999997E-7 : f32
    %43 = arith.addf %42, %cst_11 : f32
    %44 = math.log %43 : f32
    %cst_12 = arith.constant -2.000000e+01 : f32
    %45 = arith.mulf %cst_12, %44 : f32
    %cst_13 = arith.constant 0.434294492 : f32
    %46 = arith.mulf %45, %cst_13 : f32
    %47 = vector.broadcast %46 : f32 to vector<1x1xf32>
    %c0_14 = arith.constant 0 : index
    %c0_15 = arith.constant 0 : index
    %48 = vector.load %arg2[%c0_14, %c0_15] : memref<1x1xf32, #tpu.memory_space<vmem>>, vector<1x1xf32>
    tpu.vector_store %arg2[%c0_14, %c0_15], %47 {strides = array<i32>} : memref<1x1xf32, #tpu.memory_space<vmem>>, vector<1x1xf32>,
    return
  }
}

</mosaic_0001>

<llo_original>
// kernel: tpu_custom_call.1
$region0: #{tpu_custom_call.1}
  #allocation0 [shape = 'u32[]', space=smem, size = 0x4, offset = 0x4, fixed_abs, tag = 'smem constant byte address 0x4 - core index']
  #allocation1 [shape = 'u32[72,128]{1,0:T(1,128)}', space=vmem, size = 0x9000, scoped, tag = 'internal scratch']
  %s0 = inlined_call_operand.hbm [shape: f32[32,128], index: 0, kind: input, shape index: {}]
  %s1 = inlined_call_operand.hbm [shape: f32[32,128], index: 1, kind: input, shape index: {}]
  %s2 = inlined_call_operand.hbm [shape: f32[1,1], index: 2, kind: output, shape index: {}]
  %s3 = sld [smem:[#allocation0]]
  $region26: #{tpu_custom_call.1} parent=0
    _
  %s5 = ssub.s32 1, %s3
  %s6 = scalar_select 0, %s5, %s3
  $region1: #{tpu_custom_call.1} parent=0
    #allocation2 [shape = 'u8[16384]{0}', space=vmem, size = 0x4000, scoped, tag = 'input window, operand 0, single buffered']
    #allocation3 [shape = 's32[1]{0}', space=sflag, size = 0x4, scoped, tag = 'scoped memory for tpu_custom_call.1']
    #allocation4 [shape = 's32[1]{0}', space=sflag, size = 0x4, scoped, tag = 'scoped memory for tpu_custom_call.1']
    #allocation5 [shape = 'u8[16384]{0}', space=vmem, size = 0x4000, scoped, tag = 'input window, operand 1, single buffered']
    #allocation6 [shape = 's32[1]{0}', space=sflag, size = 0x4, scoped, tag = 'scoped memory for tpu_custom_call.1']
    #allocation7 [shape = 'u8[512]{0}', space=vmem, size = 0x400, scoped, tag = 'output window, operand 0, single buffered']
    %7 = vsyncpa [#allocation3], 0
    %8 = vsyncpa [#allocation6], 0
    %9 = vsyncpa [#allocation4], 0
    // Predicated region
    $region2: #{tpu_custom_call.1} parent=1 // pred_check
      _
    $region3: #{tpu_custom_call.1} parent=1 // pred_check_branch
      %11 = sbr.rel (0) target = $region5
    $region4: #{tpu_custom_call.1} parent=1 // pred_region
      %13 = vsyncadd [#allocation3], 0
      %s14 = sshll.u32 %s0, 4
      %s15 = int_to_ptr.hbm [resolvable:$true] %s14
      %s16 = sshll.u32 [#allocation2], 4
      %s17 = int_to_ptr.vmem [resolvable:$true] %s16
      %22 = dma.hbm_to_vmem [thread:$0]  %s15, 512, %s17, [#allocation3], 128, 128, 8
    $region5: #{tpu_custom_call.1} parent=1 // pred_fallthru
      _
    // Predicated region
    $region6: #{tpu_custom_call.1} parent=1 // pred_check
      _
    $region7: #{tpu_custom_call.1} parent=1 // pred_check_branch
      %24 = sbr.rel (0) target = $region9
    $region8: #{tpu_custom_call.1} parent=1 // pred_region
      %26 = vsyncadd [#allocation6], 0
      %s27 = sshll.u32 %s1, 4
      %s28 = int_to_ptr.hbm [resolvable:$true] %s27
      %s29 = sshll.u32 [#allocation5], 4
      %s30 = int_to_ptr.vmem [resolvable:$true] %s29
      %35 = dma.hbm_to_vmem [thread:$0]  %s28, 512, %s30, [#allocation6], 128, 128, 8
    $region9: #{tpu_custom_call.1} parent=1 // pred_fallthru
      _
    // Predicated region
    $region10: #{tpu_custom_call.1} parent=1 // pred_check
      _
    $region11: #{tpu_custom_call.1} parent=1 // pred_check_branch
      %37 = sbr.rel (0) target = $region13
    $region12: #{tpu_custom_call.1} parent=1 // pred_region
      %39 = dma.done [#allocation3], 512
    $region13: #{tpu_custom_call.1} parent=1 // pred_fallthru
      _
    // Predicated region
    $region14: #{tpu_custom_call.1} parent=1 // pred_check
      _
    $region15: #{tpu_custom_call.1} parent=1 // pred_check_branch
      %41 = sbr.rel (0) target = $region17
    $region16: #{tpu_custom_call.1} parent=1 // pred_region
      %43 = dma.done [#allocation6], 512
    $region17: #{tpu_custom_call.1} parent=1 // pred_fallthru
      _
    %44 = vadd.xlane.f32.xlu0 0.0
    %v45 = vpop.xlane.xlu0 %44
    %v46 = vrot.slane %v45, 4
    %v47 = vadd.f32 %v45, %v46
    %v48 = vrot.slane %v47, 2
    %v49 = vadd.f32 %v47, %v48
    %v50 = vrot.slane %v49, 1
    %v51 = vadd.f32 %v49, %v50
    %s52 = vtos %v51
    %v53 = vld [vmem:[#allocation2] sm:$0xff]
    %v54 = vld [vmem:[#allocation2 + $0x8] sm:$0xff]
    %v55 = vld [vmem:[#allocation2 + $0x10] sm:$0xff]
    %v56 = vld [vmem:[#allocation2 + $0x18] sm:$0xff]
    %v57 = vld [vmem:[#allocation5] sm:$0xff]
    %v58 = vld [vmem:[#allocation5 + $0x8] sm:$0xff]
    %v59 = vld [vmem:[#allocation5 + $0x10] sm:$0xff]
    %v60 = vld [vmem:[#allocation5 + $0x18] sm:$0xff]
    %v61 = vmul.f32 %v57, %v53
    %v62 = vmul.f32 %v58, %v54
    %v63 = vmul.f32 %v59, %v55
    %v64 = vmul.f32 %v60, %v56
    %v65 = vadd.f32 %v61, %v62
    %v66 = vadd.f32 %v65, %v63
    %v67 = vadd.f32 %v66, %v64
    %68 = vadd.xlane.f32.xlu0 %v67
    %v69 = vpop.xlane.xlu0 %68
    %v70 = vrot.slane %v69, 4
    %v71 = vadd.f32 %v69, %v70
    %v72 = vrot.slane %v71, 2
    %v73 = vadd.f32 %v71, %v72
    %v74 = vrot.slane %v73, 1
    %v75 = vadd.f32 %v73, %v74
    %s76 = vtos %v75
    %s77 = sadd.f32 %s52, %s76
    %v78 = vmul.f32 %v57, %v57
    %v79 = vmul.f32 %v58, %v58
    %v80 = vmul.f32 %v59, %v59
    %v81 = vmul.f32 %v60, %v60
    %v82 = vadd.f32 %v78, %v79
    %v83 = vadd.f32 %v82, %v80
    %v84 = vadd.f32 %v83, %v81
    %85 = vadd.xlane.f32.xlu0 %v84
    %v86 = vpop.xlane.xlu0 %85
    %v87 = vrot.slane %v86, 4
    %v88 = vadd.f32 %v86, %v87
    %v89 = vrot.slane %v88, 2
    %v90 = vadd.f32 %v88, %v89
    %v91 = vrot.slane %v90, 1
    %v92 = vadd.f32 %v90, %v91
    %s93 = vtos %v92
    %s94 = sadd.f32 %s52, %s93
    %v95 = vmul.f32 %v53, %v53
    %v96 = vmul.f32 %v54, %v54
    %v97 = vmul.f32 %v55, %v55
    %v98 = vmul.f32 %v56, %v56
    %v99 = vadd.f32 %v95, %v96
    %v100 = vadd.f32 %v99, %v97
    %v101 = vadd.f32 %v100, %v98
    %102 = vadd.xlane.f32.xlu0 %v101
    %v103 = vpop.xlane.xlu0 %102
    %v104 = vrot.slane %v103, 4
    %v105 = vadd.f32 %v103, %v104
    %v106 = vrot.slane %v105, 2
    %v107 = vadd.f32 %v105, %v106
    %v108 = vrot.slane %v107, 1
    %v109 = vadd.f32 %v107, %v108
    %s110 = vtos %v109
    %s111 = sadd.f32 %s52, %s110
    %v112 = vstv %s94
    %v113 = vrcp.pop %v112
    %v114 = vmul.f32 %v112, %v113
    %v115 = vsub.f32 1.0, %v114
    %v116 = vmul.f32 %v113, %v115
    %v117 = vadd.f32 %v113, %v116
    %vm118 = vweird.f32 %v112
    %vm119 = vweird.f32 %v113
    %vm120 = vmor %vm118, %vm119
    %v121 = vsel %vm120, %v113, %v117
    %v122 = vand.u32 2147483647, %v112
    %vm123 = vcmp.eq.f32.partialorder %v122, 8.507059e+37
    %v124 = vand.u32 %v112, 2147483648
    %v125 = vor.u32 1.1754944e-38, %v124
    %v126 = vsel %vm123, %v125, %v121
    %s127 = vtos %v126
    %s128 = smul.f32 %s77, %s127
    %s129 = sand.u32 2147483647, %s128
    %v130 = vstv %s94
    %v131 = vrsqrt.pop %v130
    %v132 = vmul.f32 %v131, %v130
    %v133 = vmul.f32 %v132, %v131
    %v134 = vmul.f32 0.5, %v133
    %v135 = vsub.f32 1.5, %v134
    %v136 = vmul.f32 %v131, %v135
    %v137 = vmul.f32 %v130, %v136
    %vm138 = vcmp.eq.f32.partialorder %v130, inf
    %v139 = vsel %vm138, %v130, %v137
    %vm140 = vcmp.eq.f32.partialorder %v130, 0.0
    %v141 = vand.u32 %v130, 2147483648
    %v142 = vsel %vm140, %v141, %v139
    %s143 = vtos %v142
    %s144 = smul.f32 %s129, %s143
    %s145 = smul.f32 %s128, %s77
    %s146 = ssub.f32 %s111, %s145
    %s147 = smax.f32 %s146, 0.0
    %v148 = vstv %s147
    %v149 = vrsqrt.pop %v148
    %v150 = vmul.f32 %v149, %v148
    %v151 = vmul.f32 %v150, %v149
    %v152 = vmul.f32 0.5, %v151
    %v153 = vsub.f32 1.5, %v152
    %v154 = vmul.f32 %v149, %v153
    %v155 = vmul.f32 %v148, %v154
    %vm156 = vcmp.eq.f32.partialorder %v148, inf
    %v157 = vsel %vm156, %v148, %v155
    %vm158 = vcmp.eq.f32.partialorder %v148, 0.0
    %v159 = vand.u32 %v148, 2147483648
    %v160 = vsel %vm158, %v159, %v157
    %s161 = vtos %v160
    %s162 = sadd.f32 %s161, 1e-06
    %v163 = vstv %s162
    %v164 = vrcp.pop %v163
    %v165 = vmul.f32 %v163, %v164
    %v166 = vsub.f32 1.0, %v165
    %v167 = vmul.f32 %v164, %v166
    %v168 = vadd.f32 %v164, %v167
    %vm169 = vweird.f32 %v163
    %vm170 = vweird.f32 %v164
    %vm171 = vmor %vm169, %vm170
    %v172 = vsel %vm171, %v164, %v168
    %v173 = vand.u32 2147483647, %v163
    %vm174 = vcmp.eq.f32.partialorder %v173, 8.507059e+37
    %v175 = vand.u32 %v163, 2147483648
    %v176 = vor.u32 1.1754944e-38, %v175
    %v177 = vsel %vm174, %v176, %v172
    %s178 = vtos %v177
    %s179 = smul.f32 %s144, %s178
    %s180 = sadd.f32 %s179, 1e-06
    %v181 = vstv %s180
    %v182 = vlog2.pop %v181
    %v183 = vmul.f32 %v182, 0.6931472
    %s184 = vtos %v183
    %s185 = smul.f32 %s184, -20.0
    %s186 = smul.f32 %s185, 0.4342945
    %v187 = vstv %s186
    %vm188 = vcmask 0
    %189 = vst.msk [vmem:[#allocation7] sm:$0x1] %vm188, %v187
    // Predicated region
    $region18: #{tpu_custom_call.1} parent=1 // pred_check
      _
    $region19: #{tpu_custom_call.1} parent=1 // pred_check_branch
      %191 = sbr.rel (0) target = $region21
    $region20: #{tpu_custom_call.1} parent=1 // pred_region
      %193 = vsyncadd [#allocation4], 0
      %s195 = sshll.u32 [#allocation7], 4
      %s196 = int_to_ptr.vmem [resolvable:$true] %s195
      %s197 = sshll.u32 %s2, 4
      %s198 = int_to_ptr.hbm [resolvable:$true] %s197
      %200 = dma.vmem_to_hbm [thread:$0]  %s196, 16, %s198, [#allocation4]
    $region21: #{tpu_custom_call.1} parent=1 // pred_fallthru
      _
    // Predicated region
    $region22: #{tpu_custom_call.1} parent=1 // pred_check
      _
    $region23: #{tpu_custom_call.1} parent=1 // pred_check_branch
      %202 = sbr.rel (0) target = $region25
    $region24: #{tpu_custom_call.1} parent=1 // pred_region
      %204 = dma.done [#allocation4], 16
    $region25: #{tpu_custom_call.1} parent=1 // pred_fallthru
      _
    %205 = vsyncpa [#allocation3], 1
    %206 = vsyncpa [#allocation6], 1
    %207 = vsyncpa [#allocation4], 1

</llo_original>
